<compile_context>
chip_gen: v6e
topology: v6e:2x2x1
jax: 0.10.0
libtpu: 0.0.40
codegen_flags: <defaults>
</compile_context>

<pallas_src>
import jax
import jax.numpy as jnp
from jax.experimental import pallas as pl
from jax.experimental.pallas import tpu as pltpu


def _regression_kernel(w_ref, b_ref, x_ref, o_ref):
    # w_ref, b_ref: (1, 1) f32 scalars in SMEM; x_ref, o_ref: (tile_rows, lanes)
    # VMEM tiles.  One scalar-broadcast FMA per block, computed in f32
    # in-register and stored in the I/O dtype (kernel is HBM-bandwidth bound,
    # so the in-register upcast is free).
    x = x_ref[...]
    o_ref[...] = (x.astype(jnp.float32) * w_ref[0, 0] + b_ref[0, 0]).astype(o_ref.dtype)


def _tile_bytes():
    """Per-buffer tile budget: conservative on <=v5 (16 MiB scoped VMEM default)."""
    try:
        kind = jax.devices()[0].device_kind.lower()
    except Exception:
        return 2 << 20
    for old in ("v2", "v3", "v4", "v5"):
        if old in kind:
            return 2 << 20          # 2 MiB/buffer -> ~8 MiB resident (in+out, x2 buffers)
    return 4 << 20                  # v6e / v7x: 4 MiB/buffer -> ~16 MiB resident


def _run_tiles(x2d, w_arr, b_arr):
    """Run the elementwise kernel over a lane-dense 2-D slab (rows, lanes)."""
    rows, lanes = x2d.shape
    dt = x2d.dtype
    itemsize = dt.itemsize
    q = 8 * max(1, 4 // itemsize)          # sublane quantum: 8 f32, 16 bf16/f16
    cap = max(q, (_tile_bytes() // (lanes * itemsize)) // q * q)

    if rows < 2 * q:
        # Single full-extent block (always layout-legal, no alignment needed).
        tile_rows = rows
    else:
        # Guarantee >= 2 grid steps so v7x's two TensorCores both get work on
        # the "parallel" axis; blocks stay q-aligned; the last block may be
        # ragged (Pallas pads the read and clamps the write-back).
        half = -(-rows // 2)
        tile_rows = min(cap, -(-half // q) * q)

    grid = (pl.cdiv(rows, tile_rows),)
    nbytes = rows * lanes * itemsize

    return pl.pallas_call(
        _regression_kernel,
        out_shape=jax.ShapeDtypeStruct((rows, lanes), dt),
        grid=grid,
        in_specs=[
            pl.BlockSpec(memory_space=pltpu.SMEM),                # w (1,1) scalar
            pl.BlockSpec(memory_space=pltpu.SMEM),                # b (1,1) scalar
            pl.BlockSpec((tile_rows, lanes), lambda i: (i, 0)),   # x row tile
        ],
        out_specs=pl.BlockSpec((tile_rows, lanes), lambda i: (i, 0)),
        compiler_params=pltpu.CompilerParams(
            dimension_semantics=("parallel",),                    # 2 TCs on v7x
        ),
        cost_estimate=pl.CostEstimate(
            flops=2 * rows * lanes, transcendentals=0, bytes_accessed=2 * nbytes
        ),
    )(w_arr, b_arr, x2d)


def regression_forward(x, w, b):
    """Computes w * x + b elementwise (RegressionModel.forward) on TPU via Pallas."""
    x = jnp.asarray(x)
    orig_shape = x.shape
    # Match the PyTorch module: float inputs keep their dtype, ints promote to f32.
    if not jnp.issubdtype(x.dtype, jnp.floating):
        x = x.astype(jnp.float32)
    dt = x.dtype

    w_arr = jnp.asarray(w, jnp.float32).reshape(1, 1)
    b_arr = jnp.asarray(b, jnp.float32).reshape(1, 1)

    xf = x.reshape(-1)
    n = xf.shape[0]
    if n == 0:
        return xf.reshape(orig_shape)

    # Zero-copy fast path: if a lane-dense width divides N exactly, the reshape
    # is free -- no pad and no trailing slice (static Python branch, n is an int).
    for lanes in (1024, 512, 256, 128):
        if n % lanes == 0:
            out2d = _run_tiles(xf.reshape(n // lanes, lanes), w_arr, b_arr)
            return out2d.reshape(orig_shape)

    # Ragged N: kernel over the 1024-aligned prefix, plain fused jnp for the
    # (<1024-element) tail.  Avoids the full-array pad copy entirely.
    lanes = 1024
    n_main = (n // lanes) * lanes
    tail = (xf[n_main:].astype(jnp.float32) * w_arr[0, 0] + b_arr[0, 0]).astype(dt)
    if n_main == 0:
        return tail.reshape(orig_shape)
    main = _run_tiles(xf[:n_main].reshape(n_main // lanes, lanes), w_arr, b_arr)
    return jnp.concatenate([main.reshape(-1), tail]).reshape(orig_shape)


if __name__ == "__main__":
    # Deterministic parameters, matching the module's __init__(w=1.0, b=1.0).
    w = 1.0
    b = 1.0

    # Inputs: the fixed tensor from the reference script, a small random batch
    # (fast path: 2048 = 2 * 1024), a ragged size (prefix + jnp tail), and a
    # bf16 array (halved HBM traffic path).
    x_fixed = jnp.array([1, 5, 10, 10, 25, 50, 70, 75, 100], dtype=jnp.float32)
    key = jax.random.PRNGKey(0)
    x_rand = jax.random.normal(key, (2, 4, 16, 16), dtype=jnp.float32)
    x_ragged = jax.random.normal(jax.random.PRNGKey(1), (37, 100), dtype=jnp.float32)
    x_bf16 = jax.random.normal(jax.random.PRNGKey(2), (48, 1024),
                               dtype=jnp.float32).astype(jnp.bfloat16)

    y_fixed = jax.block_until_ready(regression_forward(x_fixed, w, b))
    y_rand = jax.block_until_ready(regression_forward(x_rand, w, b))
    y_ragged = jax.block_until_ready(regression_forward(x_ragged, w, b))
    y_bf16 = jax.block_until_ready(regression_forward(x_bf16, w, b))

    # Reference checks (pure JAX).
    assert jnp.allclose(y_fixed, w * x_fixed + b, atol=1e-6)
    assert jnp.allclose(y_rand, w * x_rand + b, atol=1e-6)
    assert jnp.allclose(y_ragged, w * x_ragged + b, atol=1e-6)
    assert y_bf16.dtype == jnp.bfloat16
    assert jnp.allclose(
        y_bf16.astype(jnp.float32),
        jnp.float32(w) * x_bf16.astype(jnp.float32) + jnp.float32(b),
        atol=5e-2,
    )

    print("KERNEL_OK")
</pallas_src>

<mosaic_0001>
module attributes {stable_mosaic.version = 11 : i64} {
  func.func @_regression_kernel(%arg0: i32, %arg1: memref<1x1xf32, #tpu.memory_space<smem>>, %arg2: memref<1x1xf32, #tpu.memory_space<smem>>, %arg3: memref<2x1024xf32, #tpu.memory_space<vmem>>, %arg4: memref<2x1024xf32, #tpu.memory_space<vmem>>) attributes {dimension_semantics = [#tpu.dimension_semantics<parallel>], iteration_bounds = array<i64: 1>, scalar_prefetch = 0 : i64, scratch_operands = 0 : i64, tpu.core_type = #tpu.core_type<tc>, window_params = [{transform_indices = @transform_0, window_bounds = array<i64: 1, 1>}, {transform_indices = @transform_1, window_bounds = array<i64: 1, 1>}, {transform_indices = @transform_2, window_bounds = array<i64: 2, 1024>}, {transform_indices = @transform_3, window_bounds = array<i64: 2, 1024>}]} {
    %c0 = arith.constant 0 : index
    %c0_0 = arith.constant 0 : index
    %0 = vector.load %arg3[%c0, %c0_0] : memref<2x1024xf32, #tpu.memory_space<vmem>>, vector<2x1024xf32>
    %c0_1 = arith.constant 0 : index
    %c0_2 = arith.constant 0 : index
    %1 = memref.load %arg1[%c0_1, %c0_2] : memref<1x1xf32, #tpu.memory_space<smem>>
    %2 = vector.broadcast %1 : f32 to vector<2x1024xf32>
    %3 = arith.mulf %0, %2 : vector<2x1024xf32>
    %c0_3 = arith.constant 0 : index
    %c0_4 = arith.constant 0 : index
    %4 = memref.load %arg2[%c0_3, %c0_4] : memref<1x1xf32, #tpu.memory_space<smem>>
    %5 = vector.broadcast %4 : f32 to vector<2x1024xf32>
    %6 = arith.addf %3, %5 : vector<2x1024xf32>
    %c0_5 = arith.constant 0 : index
    %c0_6 = arith.constant 0 : index
    %7 = vector.load %arg4[%c0_5, %c0_6] : memref<2x1024xf32, #tpu.memory_space<vmem>>, vector<2x1024xf32>
    tpu.vector_store %arg4[%c0_5, %c0_6], %6 {strides = array<i32>} : memref<2x1024xf32, #tpu.memory_space<vmem>>, vector<2x1024xf32>,
    return
  }
  func.func @transform_0(%arg0: i32) -> (i32, i32) {
    %c0_i32 = arith.constant 0 : i32
    %c0_i32_0 = arith.constant 0 : i32
    %c0_i32_1 = arith.constant 0 : i32
    return %c0_i32, %c0_i32_0 : i32, i32
  }
  func.func @transform_1(%arg0: i32) -> (i32, i32) {
    %c0_i32 = arith.constant 0 : i32
    %c0_i32_0 = arith.constant 0 : i32
    %c0_i32_1 = arith.constant 0 : i32
    return %c0_i32, %c0_i32_0 : i32, i32
  }
  func.func @transform_2(%arg0: i32) -> (i32, i32) {
    %c0_i32 = arith.constant 0 : i32
    %c0_i32_0 = arith.constant 0 : i32
    return %arg0, %c0_i32 : i32, i32
  }
  func.func @transform_3(%arg0: i32) -> (i32, i32) {
    %c0_i32 = arith.constant 0 : i32
    %c0_i32_0 = arith.constant 0 : i32
    return %arg0, %c0_i32 : i32, i32
  }
}

</mosaic_0001>

<llo_original>
// kernel: tpu_custom_call.1
$region0: #{tpu_custom_call.1}
  #allocation0 [shape = 'u32[]', space=smem, size = 0x4, offset = 0x4, fixed_abs, tag = 'smem constant byte address 0x4 - core index']
  #allocation1 [shape = 'u32[144,128]{1,0:T(1,128)}', space=vmem, size = 0x12000, scoped, tag = 'internal scratch']
  #allocation2 [shape = 'f32[1,1]{1,0:T(1,128)S(6)}', space=smem, size = 0x200, scoped, tag = 'scoped memory for tpu_custom_call.1']
  #allocation3 [shape = 'f32[1,1]{1,0:T(1,128)S(6)}', space=smem, size = 0x200, scoped, tag = 'scoped memory for tpu_custom_call.1']
  %s0 = inlined_call_operand.<no memory space> [shape: f32[1,1], index: 0, kind: input, shape index: {}]
  %s1 = inlined_call_operand.<no memory space> [shape: f32[1,1], index: 1, kind: input, shape index: {}]
  %s2 = inlined_call_operand.hbm [shape: f32[2,1024], index: 2, kind: input, shape index: {}]
  %s3 = inlined_call_operand.hbm [shape: f32[2,1024], index: 3, kind: output, shape index: {}]
  %s4 = sld [smem:[#allocation0]]
  $region26: #{tpu_custom_call.1} parent=0
    _
  %s6 = ssub.s32 1, %s4
  %s7 = scalar_select 0, %s6, %s4
  %8 = sst [smem:[#allocation2]] %s0
  %9 = sst [smem:[#allocation3]] %s1
  $region1: #{tpu_custom_call.1} parent=0
    #allocation4 [shape = 'u8[8192]{0}', space=vmem, size = 0x2000, scoped, tag = 'input window, operand 2, single buffered']
    #allocation5 [shape = 's32[1]{0}', space=sflag, size = 0x4, scoped, tag = 'scoped memory for tpu_custom_call.1']
    #allocation6 [shape = 's32[1]{0}', space=sflag, size = 0x4, scoped, tag = 'scoped memory for tpu_custom_call.1']
    #allocation7 [shape = 'u8[8192]{0}', space=vmem, size = 0x2000, scoped, tag = 'output window, operand 0, single buffered']
    %10 = vsyncpa [#allocation5], 0
    %11 = vsyncpa [#allocation6], 0
    // Predicated region
    $region2: #{tpu_custom_call.1} parent=1 // pred_check
      _
    $region3: #{tpu_custom_call.1} parent=1 // pred_check_branch
      %13 = sbr.rel (0) target = $region5
    $region4: #{tpu_custom_call.1} parent=1 // pred_region
      _
    $region5: #{tpu_custom_call.1} parent=1 // pred_fallthru
      _
    // Predicated region
    $region6: #{tpu_custom_call.1} parent=1 // pred_check
      _
    $region7: #{tpu_custom_call.1} parent=1 // pred_check_branch
      %15 = sbr.rel (0) target = $region9
    $region8: #{tpu_custom_call.1} parent=1 // pred_region
      _
    $region9: #{tpu_custom_call.1} parent=1 // pred_fallthru
      _
    // Predicated region
    $region10: #{tpu_custom_call.1} parent=1 // pred_check
      _
    $region11: #{tpu_custom_call.1} parent=1 // pred_check_branch
      %17 = sbr.rel (0) target = $region13
    $region12: #{tpu_custom_call.1} parent=1 // pred_region
      %s19 = ssub.s32 256, 256
      %20 = vsyncadd [#allocation5], %s19
      %s22 = sshll.u32 [#allocation4], 4
      %s23 = int_to_ptr.vmem [resolvable:$true] %s22
      %25 = dma.hbm_to_vmem [thread:$0]  %s2, 256, %s23, [#allocation5]
    $region13: #{tpu_custom_call.1} parent=1 // pred_fallthru
      _
    // Predicated region
    $region14: #{tpu_custom_call.1} parent=1 // pred_check
      _
    $region15: #{tpu_custom_call.1} parent=1 // pred_check_branch
      %27 = sbr.rel (0) target = $region17
    $region16: #{tpu_custom_call.1} parent=1 // pred_region
      %28 = dma.done [#allocation5], 256
    $region17: #{tpu_custom_call.1} parent=1 // pred_fallthru
      _
    %v29 = vld [vmem:[#allocation4] sm:$0xff]
    %v30 = vld [vmem:[#allocation4 + $0x8] sm:$0xff]
    %s31 = sld [smem:[#allocation2]]
    %v32 = vstv %s31
    %v33 = vmul.f32 %v29, %v32
    %v34 = vmul.f32 %v30, %v32
    %s35 = sld [smem:[#allocation3]]
    %v36 = vstv %s35
    %v37 = vadd.f32 %v33, %v36
    %v38 = vadd.f32 %v34, %v36
    %39 = vst [vmem:[#allocation7] sm:$0xff] %v37
    %40 = vst [vmem:[#allocation7 + $0x8] sm:$0xff] %v38
    // Predicated region
    $region18: #{tpu_custom_call.1} parent=1 // pred_check
      _
    $region19: #{tpu_custom_call.1} parent=1 // pred_check_branch
      %42 = sbr.rel (0) target = $region21
    $region20: #{tpu_custom_call.1} parent=1 // pred_region
      %s44 = ssub.s32 256, 256
      %45 = vsyncadd [#allocation6], %s44
      %s47 = sshll.u32 [#allocation7], 4
      %s48 = int_to_ptr.vmem [resolvable:$true] %s47
      %50 = dma.vmem_to_hbm [thread:$0]  %s48, 256, %s3, [#allocation6]
    $region21: #{tpu_custom_call.1} parent=1 // pred_fallthru
      _
    // Predicated region
    $region22: #{tpu_custom_call.1} parent=1 // pred_check
      _
    $region23: #{tpu_custom_call.1} parent=1 // pred_check_branch
      %52 = sbr.rel (0) target = $region25
    $region24: #{tpu_custom_call.1} parent=1 // pred_region
      %53 = dma.done [#allocation6], 256
    $region25: #{tpu_custom_call.1} parent=1 // pred_fallthru
      _
    %54 = vsyncpa [#allocation5], 1
    %55 = vsyncpa [#allocation6], 1

</llo_original>
